<compile_context>
chip_gen: v5e
topology: v5e:2x2
jax: 0.10.0
libtpu: 0.0.40
codegen_flags: <defaults>
</compile_context>

<pallas_src>
import math
import numpy as np
import jax
import jax.numpy as jnp
from jax import lax
from jax.experimental import pallas as pl
from jax.experimental.pallas import tpu as pltpu

# ----- model config (small shapes consistent with the module's forward) -----
VOCAB = 20          # embeddings.shape[0]
EMB_DIM = 32        # embeddings.shape[1] == input_size
HIDDEN = 32         # hidden_size (also dim_feedforward)
N_CLASSES = 4
N_BLOCKS = 1
N_HEADS = 1
SEQ = 8
BATCH = 2
POS_ENC_LEN = 16

LN_EPS = 1e-5
NEG_INF = -1e9
LANE = 128
SUB = 8

# ----- fused / padded layout constants -----
VOCAB_PAD = 32                      # word-embedding rows padded
POS_PAD = 32                        # positional table rows padded (POS_ENC_LEN+1 <= 32)
NEMB = VOCAB_PAD + POS_PAD          # combined one-hot width (word | pos)
D_PAD = LANE                        # q / k / v each padded to one full lane tile
QKV_W = 3 * D_PAD                   # fused qkv output width, 128-aligned slices
CLS_PAD = LANE                      # classifier logits padded to a full lane tile
SLAB_W = QKV_W                      # slab lane width (widest weight)

# ----- grid: one "parallel" step per batch group (2 TCs on v7x; harmless on 1-TC) -----
GROUPS = 2
assert BATCH % GROUPS == 0
B_PER_GROUP = BATCH // GROUPS
GS = B_PER_GROUP * SEQ              # token rows handled per grid step
OUT_ROWS = max(SUB, ((B_PER_GROUP + SUB - 1) // SUB) * SUB)   # 8-sublane-padded output tile


# -------------------- slab layouts (shared by host packing and kernel slices) --------------------
def _wslab_layout(n_blocks=N_BLOCKS):
    lay, off = {}, 0
    def add(name, rows, cols):
        nonlocal off
        lay[name] = (off, rows, cols)
        off += rows
    add("emb", NEMB, EMB_DIM)                    # [word-emb rows 0:32 ; pos-enc rows 32:64]
    add("w1", EMB_DIM, HIDDEN)
    for l in range(n_blocks):
        add(f"wqkv{l}", HIDDEN, QKV_W)           # Wq @ cols 0:, Wk @ 128:, Wv @ 256: (rest 0)
        add(f"wo{l}", D_PAD, HIDDEN)             # contract dim padded to 128 (rows 32.. are 0)
        add(f"wf1{l}", HIDDEN, HIDDEN)
        add(f"wf2{l}", HIDDEN, HIDDEN)
    add("wc1", HIDDEN, HIDDEN)
    add("wc2", HIDDEN, CLS_PAD)
    return lay, off


def _fslab_layout(n_blocks=N_BLOCKS):
    lay, off = {}, 0
    def add(name, cols):
        nonlocal off
        lay[name] = (off, cols)
        off += 1
    add("b1", HIDDEN)
    for l in range(n_blocks):
        add(f"bqkv{l}", QKV_W)
        add(f"bo{l}", HIDDEN)
        add(f"g1{l}", HIDDEN); add(f"be1{l}", HIDDEN)
        add(f"bf1{l}", HIDDEN); add(f"bf2{l}", HIDDEN)
        add(f"g2{l}", HIDDEN); add(f"be2{l}", HIDDEN)
    add("bc1", HIDDEN)
    add("bc2", CLS_PAD)
    return lay, off


W_LAY, W_ROWS = _wslab_layout()
F_LAY, F_ROWS = _fslab_layout()


# -------------------- Pallas kernel --------------------
def _w(ref, name):
    off, rows, cols = W_LAY[name]
    return ref[off:off + rows, 0:cols]           # static slab slice (bf16)


def _f(ref, name):
    off, cols = F_LAY[name]
    return ref[off:off + 1, 0:cols]              # (1, cols) f32


def _mm(a_f32, w_bf16):
    """MXU matmul: bf16 operands, f32 accumulation (weight already bf16)."""
    return jnp.dot(a_f32.astype(jnp.bfloat16), w_bf16,
                   preferred_element_type=jnp.float32)


def _layer_norm(x, g, b):
    mu = jnp.mean(x, axis=-1, keepdims=True)
    var = jnp.mean((x - mu) ** 2, axis=-1, keepdims=True)
    return (x - mu) * lax.rsqrt(var + LN_EPS) * g + b


def sanet_kernel(tok_ref, kmask_ref, wslab_ref, fslab_ref, out_ref):
    # tok_ref:   (GS, 1)            int32 token ids for this batch group (batch-major)
    # kmask_ref: (B_PER_GROUP,1,SEQ) f32 additive key-padding mask (0 / -1e9)
    # wslab_ref: (W_ROWS, SLAB_W)   bf16 — all matmul weights
    # fslab_ref: (F_ROWS, SLAB_W)   f32  — all biases / LayerNorm params
    # out_ref:   (OUT_ROWS, CLS_PAD) f32 — padded logits tile
    tok = tok_ref[...]                                               # (GS, 1)

    # ---- word embedding + positional encoding as ONE fused one-hot MXU matmul ----
    s_idx = lax.broadcasted_iota(jnp.int32, (GS, 1), 0)
    if B_PER_GROUP > 1:
        s_idx = s_idx % SEQ                                          # position within sequence
    pos = jnp.where(tok == 0, 0, s_idx + 1)                          # padding_idx = 0
    lane = lax.broadcasted_iota(jnp.int32, (GS, NEMB), 1)
    onehot = jnp.where(jnp.logical_or(lane == tok, lane == pos + VOCAB_PAD),
                       1.0, 0.0).astype(jnp.bfloat16)                # two ones per row
    enc = jnp.dot(onehot, _w(wslab_ref, "emb"),
                  preferred_element_type=jnp.float32)                # (GS, E) = emb[tok]+pos[pos]

    # ---- first linear layer ----
    x = _mm(enc, _w(wslab_ref, "w1")) + _f(fslab_ref, "b1")          # (GS, H)

    kmask = kmask_ref[...]                                           # (G, 1, S)
    scale = 1.0 / math.sqrt(HIDDEN // N_HEADS)

    for l in range(N_BLOCKS):
        # ---- self-attention (single head), post-LN encoder layer ----
        qkv = _mm(x, _w(wslab_ref, f"wqkv{l}")) + _f(fslab_ref, f"bqkv{l}")   # (GS, 384)
        qkv = qkv.reshape(B_PER_GROUP, SEQ, QKV_W)
        q = qkv[:, :, 0:D_PAD].astype(jnp.bfloat16)                  # 128-aligned free slices;
        k = qkv[:, :, D_PAD:2 * D_PAD].astype(jnp.bfloat16)          # lanes >= 32 are exactly 0
        v = qkv[:, :, 2 * D_PAD:3 * D_PAD].astype(jnp.bfloat16)
        scores = jnp.einsum("gqd,gkd->gqk", q, k,
                            preferred_element_type=jnp.float32) * scale + kmask   # (G, S, S)
        scores = scores - jnp.max(scores, axis=-1, keepdims=True)
        p = jnp.exp(scores)
        attn = p * pl.reciprocal(jnp.sum(p, axis=-1, keepdims=True), approx=True)
        ctx = jnp.einsum("gqk,gkd->gqd", attn.astype(jnp.bfloat16), v,
                         preferred_element_type=jnp.float32)         # (G, S, 128)
        ao = _mm(ctx.reshape(GS, D_PAD), _w(wslab_ref, f"wo{l}")) + _f(fslab_ref, f"bo{l}")
        x = _layer_norm(x + ao, _f(fslab_ref, f"g1{l}"), _f(fslab_ref, f"be1{l}"))
        # ---- feed-forward (relu) ----
        h = jnp.maximum(_mm(x, _w(wslab_ref, f"wf1{l}")) + _f(fslab_ref, f"bf1{l}"), 0.0)
        ff = _mm(h, _w(wslab_ref, f"wf2{l}")) + _f(fslab_ref, f"bf2{l}")
        x = _layer_norm(x + ff, _f(fslab_ref, f"g2{l}"), _f(fslab_ref, f"be2{l}"))

    # ---- max over sequence positions (includes pads, like torch.max(x, 0)) ----
    if B_PER_GROUP == 1:
        pooled = jnp.max(x, axis=0, keepdims=True)                   # (1, H)
    else:
        pooled = jnp.max(x.reshape(B_PER_GROUP, SEQ, HIDDEN), axis=1)
    if OUT_ROWS > B_PER_GROUP:                                       # pad to 8 sublanes -> unmasked vst
        pooled = jnp.concatenate(
            [pooled, jnp.zeros((OUT_ROWS - B_PER_GROUP, HIDDEN), jnp.float32)], axis=0)

    # ---- classifier ----
    hc = jnp.maximum(_mm(pooled, _w(wslab_ref, "wc1")) + _f(fslab_ref, "bc1"), 0.0)
    out_ref[...] = _mm(hc, _w(wslab_ref, "wc2")) + _f(fslab_ref, "bc2")   # (OUT_ROWS, 128)


@jax.jit
def sanet_forward(tokens_sb, wslab, fslab):
    """tokens_sb: (S, B) int32 (PyTorch layout). Returns (B, n_classes) f32 logits."""
    tok_bs = tokens_sb.T                                             # (B, S) batch-major
    tok_col = tok_bs.reshape(BATCH * SEQ, 1).astype(jnp.int32)       # (B*S, 1)
    keymask = jnp.where(tok_bs == 0, NEG_INF, 0.0).astype(jnp.float32)[:, None, :]  # (B,1,S)

    out = pl.pallas_call(
        sanet_kernel,
        out_shape=jax.ShapeDtypeStruct((GROUPS * OUT_ROWS, CLS_PAD), jnp.float32),
        grid=(GROUPS,),
        in_specs=[
            pl.BlockSpec((GS, 1), lambda g: (g, 0)),
            pl.BlockSpec((B_PER_GROUP, 1, SEQ), lambda g: (g, 0, 0)),
            pl.BlockSpec((W_ROWS, SLAB_W), lambda g: (0, 0)),        # weights stay resident
            pl.BlockSpec((F_ROWS, SLAB_W), lambda g: (0, 0)),
        ],
        out_specs=pl.BlockSpec((OUT_ROWS, CLS_PAD), lambda g: (g, 0)),
        compiler_params=pltpu.CompilerParams(dimension_semantics=("parallel",)),
    )(tok_col, keymask, wslab, fslab)

    out = out.reshape(GROUPS, OUT_ROWS, CLS_PAD)[:, :B_PER_GROUP, :N_CLASSES]
    return out.reshape(BATCH, N_CLASSES)


# -------------------- host-side: params, slab packing, embedding, reference --------------------
def pos_enc_init(n_pos, pos_dim):
    n_pos = n_pos + 1
    pe = np.array([[p / np.power(10000, 2 * (j // 2) / pos_dim) for j in range(pos_dim)]
                   if p != 0 else np.zeros(pos_dim) for p in range(n_pos)])
    pe[1:, 0::2] = np.sin(pe[1:, 0::2])
    pe[1:, 1::2] = np.cos(pe[1:, 1::2])
    return pe.astype(np.float32)


def init_params(key):
    L, H, E, C = N_BLOCKS, HIDDEN, EMB_DIM, N_CLASSES
    shapes = {
        "w1": (E, H), "b1": (1, H),
        "wq": (L, H, H), "bq": (L, 1, H),
        "wk": (L, H, H), "bk": (L, 1, H),
        "wv": (L, H, H), "bv": (L, 1, H),
        "wo": (L, H, H), "bo": (L, 1, H),
        "wf1": (L, H, H), "bf1": (L, 1, H),
        "wf2": (L, H, H), "bf2": (L, 1, H),
        "wc1": (H, H), "bc1": (1, H),
        "wc2": (H, C), "bc2": (1, C),
    }
    keys = jax.random.split(key, len(shapes))
    p = {name: (0.1 * jax.random.normal(k, shp)).astype(jnp.float32)
         for (name, shp), k in zip(shapes.items(), keys)}
    p["g1"] = jnp.ones((L, 1, H), jnp.float32)
    p["be1"] = jnp.zeros((L, 1, H), jnp.float32)
    p["g2"] = jnp.ones((L, 1, H), jnp.float32)
    p["be2"] = jnp.zeros((L, 1, H), jnp.float32)
    return p


def build_slabs(params, emb_table, pos_table):
    """Pack all matmul weights into one bf16 slab, all biases/LN params into one f32 slab."""
    wslab = np.zeros((W_ROWS, SLAB_W), np.float32)
    fslab = np.zeros((F_ROWS, SLAB_W), np.float32)

    def putw(name, mat):
        off, _, _ = W_LAY[name]
        m = np.asarray(mat, np.float32)
        wslab[off:off + m.shape[0], :m.shape[1]] = m

    def putf(name, vec):
        off, _ = F_LAY[name]
        v = np.asarray(vec, np.float32).reshape(1, -1)
        fslab[off, :v.shape[1]] = v

    emb_block = np.zeros((NEMB, EMB_DIM), np.float32)
    emb_block[:emb_table.shape[0], :] = np.asarray(emb_table)
    emb_block[VOCAB_PAD:VOCAB_PAD + pos_table.shape[0], :] = np.asarray(pos_table)
    putw("emb", emb_block)
    putw("w1", params["w1"]); putf("b1", params["b1"])
    for l in range(N_BLOCKS):
        wqkv = np.zeros((HIDDEN, QKV_W), np.float32)
        bqkv = np.zeros((QKV_W,), np.float32)
        for j, (wn, bn) in enumerate((("wq", "bq"), ("wk", "bk"), ("wv", "bv"))):
            wqkv[:, j * D_PAD:j * D_PAD + HIDDEN] = np.asarray(params[wn][l])
            bqkv[j * D_PAD:j * D_PAD + HIDDEN] = np.asarray(params[bn][l]).reshape(-1)
        putw(f"wqkv{l}", wqkv); putf(f"bqkv{l}", bqkv)
        wo = np.zeros((D_PAD, HIDDEN), np.float32)
        wo[:HIDDEN, :] = np.asarray(params["wo"][l])
        putw(f"wo{l}", wo); putf(f"bo{l}", params["bo"][l])
        putw(f"wf1{l}", params["wf1"][l]); putf(f"bf1{l}", params["bf1"][l])
        putw(f"wf2{l}", params["wf2"][l]); putf(f"bf2{l}", params["bf2"][l])
        putf(f"g1{l}", params["g1"][l]); putf(f"be1{l}", params["be1"][l])
        putf(f"g2{l}", params["g2"][l]); putf(f"be2{l}", params["be2"][l])
    putw("wc1", params["wc1"]); putf("bc1", params["bc1"])
    wc2 = np.zeros((HIDDEN, CLS_PAD), np.float32)
    wc2[:, :N_CLASSES] = np.asarray(params["wc2"])
    putw("wc2", wc2)
    bc2 = np.zeros((CLS_PAD,), np.float32)
    bc2[:N_CLASSES] = np.asarray(params["bc2"]).reshape(-1)
    putf("bc2", bc2)
    return jnp.asarray(wslab, jnp.bfloat16), jnp.asarray(fslab, jnp.float32)


def embed(tokens_sb, emb_table, pos_table):
    """Reference-side embedding: word embedding + sinusoidal positional encoding."""
    enc = emb_table[tokens_sb]                                       # (S, B, E)
    S, B = tokens_sb.shape
    pos = jnp.arange(1, S + 1, dtype=jnp.int32)[:, None] * jnp.ones((1, B), jnp.int32)
    pos = jnp.where(tokens_sb == 0, 0, pos)
    return enc + pos_table[pos]


def _ln_ref(x, g, b):
    mu = jnp.mean(x, axis=-1, keepdims=True)
    var = jnp.mean((x - mu) ** 2, axis=-1, keepdims=True)
    return (x - mu) * lax.rsqrt(var + LN_EPS) * g + b


def sanet_reference(enc_bse, negmask_b1s, p, matmul_dtype=None):
    """Pure-JAX reference. matmul_dtype=jnp.bfloat16 matches the kernel's MXU policy."""
    def mm(eq, a, b):
        if matmul_dtype is not None:
            a = a.astype(matmul_dtype)
            b = b.astype(matmul_dtype)
        return jnp.einsum(eq, a, b, preferred_element_type=jnp.float32)

    x = mm("bse,eh->bsh", enc_bse, p["w1"]) + p["b1"]
    scale = 1.0 / math.sqrt(HIDDEN // N_HEADS)
    for l in range(N_BLOCKS):
        q = mm("bsh,hk->bsk", x, p["wq"][l]) + p["bq"][l]
        k = mm("bsh,hk->bsk", x, p["wk"][l]) + p["bk"][l]
        v = mm("bsh,hk->bsk", x, p["wv"][l]) + p["bv"][l]
        scores = mm("bqh,bkh->bqk", q, k) * scale + negmask_b1s
        attn = jax.nn.softmax(scores, axis=-1)
        ao = mm("bqk,bkh->bqh", attn, v)
        ao = mm("bsh,hk->bsk", ao, p["wo"][l]) + p["bo"][l]
        x = _ln_ref(x + ao, p["g1"][l], p["be1"][l])
        h = jax.nn.relu(mm("bsh,hk->bsk", x, p["wf1"][l]) + p["bf1"][l])
        ff = mm("bsh,hk->bsk", h, p["wf2"][l]) + p["bf2"][l]
        x = _ln_ref(x + ff, p["g2"][l], p["be2"][l])
    pooled = jnp.max(x, axis=1)                                      # (B, H)
    hc = jax.nn.relu(mm("bh,hk->bk", pooled, p["wc1"]) + p["bc1"])
    return mm("bh,hk->bk", hc, p["wc2"]) + p["bc2"]


# -------------------- main --------------------
if __name__ == "__main__":
    key = jax.random.PRNGKey(0)
    k_emb, k_tok, k_par = jax.random.split(key, 3)

    emb_table = (0.1 * jax.random.normal(k_emb, (VOCAB, EMB_DIM))).astype(jnp.float32)
    emb_table = emb_table.at[0].set(0.0)                             # padding row
    pos_table = jnp.asarray(pos_enc_init(POS_ENC_LEN, EMB_DIM))      # (POS_ENC_LEN+1, E)

    tokens = jax.random.randint(k_tok, (SEQ, BATCH), 1, VOCAB).astype(jnp.int32)  # (S, B)
    tokens = tokens.at[-2:, 0].set(0)     # pad tail of sequence 0
    tokens = tokens.at[-3:, 1].set(0)     # pad tail of sequence 1
    pad_bs = (tokens == 0).T              # (B, S) key-padding mask, True = pad

    params = init_params(k_par)
    wslab, fslab = build_slabs(params, emb_table, pos_table)

    out = sanet_forward(tokens, wslab, fslab)
    out = jax.block_until_ready(out)

    assert out.shape == (BATCH, N_CLASSES)
    assert bool(jnp.all(jnp.isfinite(out)))

    # reference (exact f32 embedding gather on host)
    enc_sbe = embed(tokens, emb_table, pos_table)                    # (S, B, E)
    enc_bse = jnp.transpose(enc_sbe, (1, 0, 2))                      # (B, S, E)
    negmask = jnp.where(pad_bs, NEG_INF, 0.0).astype(jnp.float32).reshape(BATCH, 1, SEQ)

    # tight check: reference with the same bf16-operand / f32-accumulate matmul policy
    ref_bf16 = sanet_reference(enc_bse, negmask, params, matmul_dtype=jnp.bfloat16)
    np.testing.assert_allclose(np.asarray(out), np.asarray(ref_bf16), atol=2e-2, rtol=2e-2)

    # sanity check: full-f32 reference (difference is the bf16 MXU / bf16-table policy only)
    ref_f32 = sanet_reference(enc_bse, negmask, params, matmul_dtype=None)
    np.testing.assert_allclose(np.asarray(out), np.asarray(ref_f32), atol=5e-2, rtol=5e-2)

    print("KERNEL_OK")
</pallas_src>

<mosaic_0001>
module attributes {stable_mosaic.version = 11 : i64} {
  func.func @sanet_kernel(%arg0: i32, %arg1: memref<8x1xi32, #tpu.memory_space<vmem>>, %arg2: memref<1x1x8xf32, #tpu.memory_space<vmem>>, %arg3: memref<384x384xbf16, #tpu.memory_space<vmem>>, %arg4: memref<11x384xf32, #tpu.memory_space<vmem>>, %arg5: memref<8x128xf32, #tpu.memory_space<vmem>>) attributes {dimension_semantics = [#tpu.dimension_semantics<parallel>], iteration_bounds = array<i64: 2>, scalar_prefetch = 0 : i64, scratch_operands = 0 : i64, tpu.core_type = #tpu.core_type<tc>, window_params = [{transform_indices = @transform_0, window_bounds = array<i64: 8, 1>}, {transform_indices = @transform_1, window_bounds = array<i64: 1, 1, 8>}, {pipeline_mode = #tpu.pipeline_mode<synchronous>, transform_indices = @transform_2, window_bounds = array<i64: 384, 384>}, {pipeline_mode = #tpu.pipeline_mode<synchronous>, transform_indices = @transform_3, window_bounds = array<i64: 11, 384>}, {transform_indices = @transform_4, window_bounds = array<i64: 8, 128>}]} {
    %c0 = arith.constant 0 : index
    %c0_0 = arith.constant 0 : index
    %0 = vector.load %arg1[%c0, %c0_0] : memref<8x1xi32, #tpu.memory_space<vmem>>, vector<8x1xi32>
    %1 = tpu.iota {dimensions = array<i32: 0>} : vector<8x1xi32>
    %c0_i32 = arith.constant 0 : i32
    %2 = vector.broadcast %c0_i32 : i32 to vector<8x1xi32>
    %3 = arith.cmpi eq, %0, %2 : vector<8x1xi32>
    %c1_i32 = arith.constant 1 : i32
    %4 = vector.broadcast %c1_i32 : i32 to vector<8x1xi32>
    %5 = arith.addi %1, %4 : vector<8x1xi32>
    %c0_i32_1 = arith.constant 0 : i32
    %6 = vector.broadcast %c0_i32_1 : i32 to vector<8x1xi32>
    %7 = arith.select %3, %6, %5 : vector<8x1xi1>, vector<8x1xi32>
    %8 = tpu.iota {dimensions = array<i32: 1>} : vector<8x64xi32>
    %9 = vector.broadcast %0 : vector<8x1xi32> to vector<8x64xi32>
    %10 = arith.cmpi eq, %8, %9 : vector<8x64xi32>
    %c32_i32 = arith.constant 32 : i32
    %11 = vector.broadcast %c32_i32 : i32 to vector<8x1xi32>
    %12 = arith.addi %7, %11 : vector<8x1xi32>
    %13 = vector.broadcast %12 : vector<8x1xi32> to vector<8x64xi32>
    %14 = arith.cmpi eq, %8, %13 : vector<8x64xi32>
    %15 = arith.ori %10, %14 : vector<8x64xi1>
    %cst = arith.constant 1.000000e+00 : f32
    %cst_2 = arith.constant 0.000000e+00 : f32
    %16 = vector.broadcast %cst : f32 to vector<8x64xf32>
    %17 = vector.broadcast %cst_2 : f32 to vector<8x64xf32>
    %18 = arith.select %15, %16, %17 : vector<8x64xi1>, vector<8x64xf32>
    %19 = arith.truncf %18 : vector<8x64xf32> to vector<8x64xbf16>
    %c0_3 = arith.constant 0 : index
    %c0_4 = arith.constant 0 : index
    %20 = vector.load %arg3[%c0_3, %c0_4] : memref<384x384xbf16, #tpu.memory_space<vmem>>, vector<64x32xbf16>
    %cst_5 = arith.constant dense<0.000000e+00> : vector<8x32xf32>
    %21 = tpu.matmul %19, %20, %cst_5 {dimension_numbers = #tpu.dot_dimension_numbers<[1], [0], [0], [1], [0, 0, 1, 1], [], []>} : vector<8x64xbf16>, vector<64x32xbf16>, vector<8x32xf32> -> vector<8x32xf32>
    %c64 = arith.constant 64 : index
    %c0_6 = arith.constant 0 : index
    %22 = vector.load %arg3[%c64, %c0_6] : memref<384x384xbf16, #tpu.memory_space<vmem>>, vector<32x32xbf16>
    %23 = arith.truncf %21 : vector<8x32xf32> to vector<8x32xbf16>
    %cst_7 = arith.constant dense<0.000000e+00> : vector<8x32xf32>
    %24 = tpu.matmul %23, %22, %cst_7 {dimension_numbers = #tpu.dot_dimension_numbers<[1], [0], [0], [1], [0, 0, 1, 1], [], []>} : vector<8x32xbf16>, vector<32x32xbf16>, vector<8x32xf32> -> vector<8x32xf32>
    %c0_8 = arith.constant 0 : index
    %c0_9 = arith.constant 0 : index
    %25 = vector.load %arg4[%c0_8, %c0_9] : memref<11x384xf32, #tpu.memory_space<vmem>>, vector<1x32xf32>
    %26 = vector.broadcast %25 : vector<1x32xf32> to vector<8x32xf32>
    %27 = arith.addf %24, %26 : vector<8x32xf32>
    %c0_10 = arith.constant 0 : index
    %c0_11 = arith.constant 0 : index
    %c0_12 = arith.constant 0 : index
    %28 = vector.load %arg2[%c0_10, %c0_11, %c0_12] : memref<1x1x8xf32, #tpu.memory_space<vmem>>, vector<1x1x8xf32>
    %c96 = arith.constant 96 : index
    %c0_13 = arith.constant 0 : index
    %29 = vector.load %arg3[%c96, %c0_13] : memref<384x384xbf16, #tpu.memory_space<vmem>>, vector<32x384xbf16>
    %30 = arith.truncf %27 : vector<8x32xf32> to vector<8x32xbf16>
    %cst_14 = arith.constant dense<0.000000e+00> : vector<8x384xf32>
    %31 = tpu.matmul %30, %29, %cst_14 {dimension_numbers = #tpu.dot_dimension_numbers<[1], [0], [0], [1], [0, 0, 1, 1], [], []>} : vector<8x32xbf16>, vector<32x384xbf16>, vector<8x384xf32> -> vector<8x384xf32>
    %c1 = arith.constant 1 : index
    %c0_15 = arith.constant 0 : index
    %32 = vector.load %arg4[%c1, %c0_15] : memref<11x384xf32, #tpu.memory_space<vmem>>, vector<1x384xf32>
    %33 = vector.broadcast %32 : vector<1x384xf32> to vector<8x384xf32>
    %34 = arith.addf %31, %33 : vector<8x384xf32>
    %35 = vector.shape_cast %34 : vector<8x384xf32> to vector<1x8x384xf32>
    %36 = vector.extract_strided_slice %35 {offsets = [0, 0, 0], sizes = [1, 8, 128], strides = [1, 1, 1]} : vector<1x8x384xf32> to vector<1x8x128xf32>
    %37 = arith.truncf %36 : vector<1x8x128xf32> to vector<1x8x128xbf16>
    %38 = vector.extract_strided_slice %35 {offsets = [0, 0, 128], sizes = [1, 8, 128], strides = [1, 1, 1]} : vector<1x8x384xf32> to vector<1x8x128xf32>
    %39 = arith.truncf %38 : vector<1x8x128xf32> to vector<1x8x128xbf16>
    %40 = vector.extract_strided_slice %35 {offsets = [0, 0, 256], sizes = [1, 8, 128], strides = [1, 1, 1]} : vector<1x8x384xf32> to vector<1x8x128xf32>
    %41 = arith.truncf %40 : vector<1x8x128xf32> to vector<1x8x128xbf16>
    "tpu.trace_start"() <{level = 10 : i32, message = "gqd,gkd->gqk"}> : () -> ()
    %cst_16 = arith.constant dense<0.000000e+00> : vector<1x8x8xf32>
    %42 = tpu.matmul %37, %39, %cst_16 {dimension_numbers = #tpu.dot_dimension_numbers<[2], [2], [1], [1], [0, 0, 0, 1, 1, 1], [0], [0]>} : vector<1x8x128xbf16>, vector<1x8x128xbf16>, vector<1x8x8xf32> -> vector<1x8x8xf32>
    "tpu.trace_stop"() : () -> ()
    %cst_17 = arith.constant 0.176776692 : f32
    %43 = vector.broadcast %cst_17 : f32 to vector<1x8x8xf32>
    %44 = arith.mulf %42, %43 : vector<1x8x8xf32>
    %45 = vector.broadcast %28 : vector<1x1x8xf32> to vector<1x8x8xf32>
    %46 = arith.addf %44, %45 : vector<1x8x8xf32>
    %cst_18 = arith.constant dense<0xFF800000> : vector<1x8xf32>
    %47 = vector.multi_reduction <maximumf>, %46, %cst_18 [2] : vector<1x8x8xf32> to vector<1x8xf32>
    %48 = vector.shape_cast %47 : vector<1x8xf32> to vector<1x8x1xf32>
    %49 = vector.broadcast %48 : vector<1x8x1xf32> to vector<1x8x8xf32>
    %50 = arith.subf %46, %49 : vector<1x8x8xf32>
    %51 = math.exp %50 : vector<1x8x8xf32>
    %cst_19 = arith.constant dense<0.000000e+00> : vector<1x8xf32>
    %52 = vector.multi_reduction <add>, %51, %cst_19 [2] : vector<1x8x8xf32> to vector<1x8xf32>
    %53 = vector.shape_cast %52 : vector<1x8xf32> to vector<1x8x1xf32>
    %54 = tpu.reciprocal %53 {approx = true} : vector<1x8x1xf32> -> vector<1x8x1xf32>
    %55 = vector.broadcast %54 : vector<1x8x1xf32> to vector<1x8x8xf32>
    %56 = arith.mulf %51, %55 : vector<1x8x8xf32>
    %57 = arith.truncf %56 : vector<1x8x8xf32> to vector<1x8x8xbf16>
    "tpu.trace_start"() <{level = 10 : i32, message = "gqk,gkd->gqd"}> : () -> ()
    %cst_20 = arith.constant dense<0.000000e+00> : vector<1x8x128xf32>
    %58 = tpu.matmul %57, %41, %cst_20 {dimension_numbers = #tpu.dot_dimension_numbers<[2], [1], [1], [2], [0, 0, 0, 1, 1, 2], [0], [0]>} : vector<1x8x8xbf16>, vector<1x8x128xbf16>, vector<1x8x128xf32> -> vector<1x8x128xf32>
    "tpu.trace_stop"() : () -> ()
    %59 = vector.shape_cast %58 : vector<1x8x128xf32> to vector<8x128xf32>
    %c128 = arith.constant 128 : index
    %c0_21 = arith.constant 0 : index
    %60 = vector.load %arg3[%c128, %c0_21] : memref<384x384xbf16, #tpu.memory_space<vmem>>, vector<128x32xbf16>
    %61 = arith.truncf %59 : vector<8x128xf32> to vector<8x128xbf16>
    %cst_22 = arith.constant dense<0.000000e+00> : vector<8x32xf32>
    %62 = tpu.matmul %61, %60, %cst_22 {dimension_numbers = #tpu.dot_dimension_numbers<[1], [0], [0], [1], [0, 0, 1, 1], [], []>} : vector<8x128xbf16>, vector<128x32xbf16>, vector<8x32xf32> -> vector<8x32xf32>
    %c2 = arith.constant 2 : index
    %c0_23 = arith.constant 0 : index
    %63 = vector.load %arg4[%c2, %c0_23] : memref<11x384xf32, #tpu.memory_space<vmem>>, vector<1x32xf32>
    %64 = vector.broadcast %63 : vector<1x32xf32> to vector<8x32xf32>
    %65 = arith.addf %62, %64 : vector<8x32xf32>
    %66 = arith.addf %27, %65 : vector<8x32xf32>
    %c3 = arith.constant 3 : index
    %c0_24 = arith.constant 0 : index
    %67 = vector.load %arg4[%c3, %c0_24] : memref<11x384xf32, #tpu.memory_space<vmem>>, vector<1x32xf32>
    %c4 = arith.constant 4 : index
    %c0_25 = arith.constant 0 : index
    %68 = vector.load %arg4[%c4, %c0_25] : memref<11x384xf32, #tpu.memory_space<vmem>>, vector<1x32xf32>
    %cst_26 = arith.constant dense<0.000000e+00> : vector<8xf32>
    %69 = vector.multi_reduction <add>, %66, %cst_26 [1] : vector<8x32xf32> to vector<8xf32>
    %70 = vector.shape_cast %69 : vector<8xf32> to vector<8x1xf32>
    %cst_27 = arith.constant 3.200000e+01 : f32
    %71 = vector.broadcast %cst_27 : f32 to vector<8x1xf32>
    %72 = arith.divf %70, %71 : vector<8x1xf32>
    %73 = vector.broadcast %72 : vector<8x1xf32> to vector<8x32xf32>
    %74 = arith.subf %66, %73 : vector<8x32xf32>
    %75 = arith.mulf %74, %74 : vector<8x32xf32>
    %cst_28 = arith.constant dense<0.000000e+00> : vector<8xf32>
    %76 = vector.multi_reduction <add>, %75, %cst_28 [1] : vector<8x32xf32> to vector<8xf32>
    %77 = vector.shape_cast %76 : vector<8xf32> to vector<8x1xf32>
    %cst_29 = arith.constant 3.200000e+01 : f32
    %78 = vector.broadcast %cst_29 : f32 to vector<8x1xf32>
    %79 = arith.divf %77, %78 : vector<8x1xf32>
    %80 = vector.broadcast %72 : vector<8x1xf32> to vector<8x32xf32>
    %81 = arith.subf %66, %80 : vector<8x32xf32>
    %cst_30 = arith.constant 9.99999974E-6 : f32
    %82 = vector.broadcast %cst_30 : f32 to vector<8x1xf32>
    %83 = arith.addf %79, %82 : vector<8x1xf32>
    %84 = math.rsqrt %83 : vector<8x1xf32>
    %85 = vector.broadcast %84 : vector<8x1xf32> to vector<8x32xf32>
    %86 = arith.mulf %81, %85 : vector<8x32xf32>
    %87 = vector.broadcast %67 : vector<1x32xf32> to vector<8x32xf32>
    %88 = arith.mulf %86, %87 : vector<8x32xf32>
    %89 = vector.broadcast %68 : vector<1x32xf32> to vector<8x32xf32>
    %90 = arith.addf %88, %89 : vector<8x32xf32>
    %c256 = arith.constant 256 : index
    %c0_31 = arith.constant 0 : index
    %91 = vector.load %arg3[%c256, %c0_31] : memref<384x384xbf16, #tpu.memory_space<vmem>>, vector<32x32xbf16>
    %92 = arith.truncf %90 : vector<8x32xf32> to vector<8x32xbf16>
    %cst_32 = arith.constant dense<0.000000e+00> : vector<8x32xf32>
    %93 = tpu.matmul %92, %91, %cst_32 {dimension_numbers = #tpu.dot_dimension_numbers<[1], [0], [0], [1], [0, 0, 1, 1], [], []>} : vector<8x32xbf16>, vector<32x32xbf16>, vector<8x32xf32> -> vector<8x32xf32>
    %c5 = arith.constant 5 : index
    %c0_33 = arith.constant 0 : index
    %94 = vector.load %arg4[%c5, %c0_33] : memref<11x384xf32, #tpu.memory_space<vmem>>, vector<1x32xf32>
    %95 = vector.broadcast %94 : vector<1x32xf32> to vector<8x32xf32>
    %96 = arith.addf %93, %95 : vector<8x32xf32>
    %cst_34 = arith.constant 0.000000e+00 : f32
    %97 = vector.broadcast %cst_34 : f32 to vector<8x32xf32>
    %98 = arith.maximumf %96, %97 : vector<8x32xf32>
    %c288 = arith.constant 288 : index
    %c0_35 = arith.constant 0 : index
    %99 = vector.load %arg3[%c288, %c0_35] : memref<384x384xbf16, #tpu.memory_space<vmem>>, vector<32x32xbf16>
    %100 = arith.truncf %98 : vector<8x32xf32> to vector<8x32xbf16>
    %cst_36 = arith.constant dense<0.000000e+00> : vector<8x32xf32>
    %101 = tpu.matmul %100, %99, %cst_36 {dimension_numbers = #tpu.dot_dimension_numbers<[1], [0], [0], [1], [0, 0, 1, 1], [], []>} : vector<8x32xbf16>, vector<32x32xbf16>, vector<8x32xf32> -> vector<8x32xf32>
    %c6 = arith.constant 6 : index
    %c0_37 = arith.constant 0 : index
    %102 = vector.load %arg4[%c6, %c0_37] : memref<11x384xf32, #tpu.memory_space<vmem>>, vector<1x32xf32>
    %103 = vector.broadcast %102 : vector<1x32xf32> to vector<8x32xf32>
    %104 = arith.addf %101, %103 : vector<8x32xf32>
    %105 = arith.addf %90, %104 : vector<8x32xf32>
    %c7 = arith.constant 7 : index
    %c0_38 = arith.constant 0 : index
    %106 = vector.load %arg4[%c7, %c0_38] : memref<11x384xf32, #tpu.memory_space<vmem>>, vector<1x32xf32>
    %c8 = arith.constant 8 : index
    %c0_39 = arith.constant 0 : index
    %107 = vector.load %arg4[%c8, %c0_39] : memref<11x384xf32, #tpu.memory_space<vmem>>, vector<1x32xf32>
    %cst_40 = arith.constant dense<0.000000e+00> : vector<8xf32>
    %108 = vector.multi_reduction <add>, %105, %cst_40 [1] : vector<8x32xf32> to vector<8xf32>
    %109 = vector.shape_cast %108 : vector<8xf32> to vector<8x1xf32>
    %cst_41 = arith.constant 3.200000e+01 : f32
    %110 = vector.broadcast %cst_41 : f32 to vector<8x1xf32>
    %111 = arith.divf %109, %110 : vector<8x1xf32>
    %112 = vector.broadcast %111 : vector<8x1xf32> to vector<8x32xf32>
    %113 = arith.subf %105, %112 : vector<8x32xf32>
    %114 = arith.mulf %113, %113 : vector<8x32xf32>
    %cst_42 = arith.constant dense<0.000000e+00> : vector<8xf32>
    %115 = vector.multi_reduction <add>, %114, %cst_42 [1] : vector<8x32xf32> to vector<8xf32>
    %116 = vector.shape_cast %115 : vector<8xf32> to vector<8x1xf32>
    %cst_43 = arith.constant 3.200000e+01 : f32
    %117 = vector.broadcast %cst_43 : f32 to vector<8x1xf32>
    %118 = arith.divf %116, %117 : vector<8x1xf32>
    %119 = vector.broadcast %111 : vector<8x1xf32> to vector<8x32xf32>
    %120 = arith.subf %105, %119 : vector<8x32xf32>
    %cst_44 = arith.constant 9.99999974E-6 : f32
    %121 = vector.broadcast %cst_44 : f32 to vector<8x1xf32>
    %122 = arith.addf %118, %121 : vector<8x1xf32>
    %123 = math.rsqrt %122 : vector<8x1xf32>
    %124 = vector.broadcast %123 : vector<8x1xf32> to vector<8x32xf32>
    %125 = arith.mulf %120, %124 : vector<8x32xf32>
    %126 = vector.broadcast %106 : vector<1x32xf32> to vector<8x32xf32>
    %127 = arith.mulf %125, %126 : vector<8x32xf32>
    %128 = vector.broadcast %107 : vector<1x32xf32> to vector<8x32xf32>
    %129 = arith.addf %127, %128 : vector<8x32xf32>
    %cst_45 = arith.constant dense<0xFF800000> : vector<32xf32>
    %130 = vector.multi_reduction <maximumf>, %129, %cst_45 [0] : vector<8x32xf32> to vector<32xf32>
    %131 = vector.shape_cast %130 : vector<32xf32> to vector<1x32xf32>
    %cst_46 = arith.constant 0.000000e+00 : f32
    %132 = vector.broadcast %cst_46 : f32 to vector<7x32xf32>
    %133 = tpu.concatenate %131, %132 in 0 : vector<1x32xf32>, vector<7x32xf32> -> vector<8x32xf32>
    %c320 = arith.constant 320 : index
    %c0_47 = arith.constant 0 : index
    %134 = vector.load %arg3[%c320, %c0_47] : memref<384x384xbf16, #tpu.memory_space<vmem>>, vector<32x32xbf16>
    %135 = arith.truncf %133 : vector<8x32xf32> to vector<8x32xbf16>
    %cst_48 = arith.constant dense<0.000000e+00> : vector<8x32xf32>
    %136 = tpu.matmul %135, %134, %cst_48 {dimension_numbers = #tpu.dot_dimension_numbers<[1], [0], [0], [1], [0, 0, 1, 1], [], []>} : vector<8x32xbf16>, vector<32x32xbf16>, vector<8x32xf32> -> vector<8x32xf32>
    %c9 = arith.constant 9 : index
    %c0_49 = arith.constant 0 : index
    %137 = vector.load %arg4[%c9, %c0_49] : memref<11x384xf32, #tpu.memory_space<vmem>>, vector<1x32xf32>
    %138 = vector.broadcast %137 : vector<1x32xf32> to vector<8x32xf32>
    %139 = arith.addf %136, %138 : vector<8x32xf32>
    %cst_50 = arith.constant 0.000000e+00 : f32
    %140 = vector.broadcast %cst_50 : f32 to vector<8x32xf32>
    %141 = arith.maximumf %139, %140 : vector<8x32xf32>
    %c352 = arith.constant 352 : index
    %c0_51 = arith.constant 0 : index
    %142 = vector.load %arg3[%c352, %c0_51] : memref<384x384xbf16, #tpu.memory_space<vmem>>, vector<32x128xbf16>
    %143 = arith.truncf %141 : vector<8x32xf32> to vector<8x32xbf16>
    %cst_52 = arith.constant dense<0.000000e+00> : vector<8x128xf32>
    %144 = tpu.matmul %143, %142, %cst_52 {dimension_numbers = #tpu.dot_dimension_numbers<[1], [0], [0], [1], [0, 0, 1, 1], [], []>} : vector<8x32xbf16>, vector<32x128xbf16>, vector<8x128xf32> -> vector<8x128xf32>
    %c10 = arith.constant 10 : index
    %c0_53 = arith.constant 0 : index
    %145 = vector.load %arg4[%c10, %c0_53] : memref<11x384xf32, #tpu.memory_space<vmem>>, vector<1x128xf32>
    %146 = vector.broadcast %145 : vector<1x128xf32> to vector<8x128xf32>
    %147 = arith.addf %144, %146 : vector<8x128xf32>
    %c0_54 = arith.constant 0 : index
    %c0_55 = arith.constant 0 : index
    %148 = vector.load %arg5[%c0_54, %c0_55] : memref<8x128xf32, #tpu.memory_space<vmem>>, vector<8x128xf32>
    tpu.vector_store %arg5[%c0_54, %c0_55], %147 {strides = array<i32>} : memref<8x128xf32, #tpu.memory_space<vmem>>, vector<8x128xf32>,
    return
  }
  func.func @transform_0(%arg0: i32) -> (i32, i32) {
    %c0_i32 = arith.constant 0 : i32
    %c0_i32_0 = arith.constant 0 : i32
    return %arg0, %c0_i32 : i32, i32
  }
  func.func @transform_1(%arg0: i32) -> (i32, i32, i32) {
    %c0_i32 = arith.constant 0 : i32
    %c0_i32_0 = arith.constant 0 : i32
    %c0_i32_1 = arith.constant 0 : i32
    return %arg0, %c0_i32, %c0_i32_0 : i32, i32, i32
  }
  func.func @transform_2(%arg0: i32) -> (i32, i32) {
    %c0_i32 = arith.constant 0 : i32
    %c0_i32_0 = arith.constant 0 : i32
    %c0_i32_1 = arith.constant 0 : i32
    return %c0_i32, %c0_i32_0 : i32, i32
  }
  func.func @transform_3(%arg0: i32) -> (i32, i32) {
    %c0_i32 = arith.constant 0 : i32
    %c0_i32_0 = arith.constant 0 : i32
    %c0_i32_1 = arith.constant 0 : i32
    return %c0_i32, %c0_i32_0 : i32, i32
  }
  func.func @transform_4(%arg0: i32) -> (i32, i32) {
    %c0_i32 = arith.constant 0 : i32
    %c0_i32_0 = arith.constant 0 : i32
    return %arg0, %c0_i32 : i32, i32
  }
}

</mosaic_0001>

<llo_original>
// kernel: sanet_forward.1
$region0: #{sanet_forward.1}
  #allocation0 [shape = 'u32[]', space=smem, size = 0x4, offset = 0x4, fixed_abs, tag = 'smem constant byte address 0x4 - core index']
  #allocation1 [shape = 'u32[72,128]{1,0:T(1,128)}', space=vmem, size = 0x9000, scoped, tag = 'internal scratch']
  %s0 = inlined_call_operand.vmem [shape: s32[16,1], index: 0, kind: input, shape index: {}]
  %s1 = inlined_call_operand.vmem [shape: f32[2,1,8], index: 1, kind: input, shape index: {}]
  %s2 = inlined_call_operand.hbm [shape: bf16[384,384], index: 2, kind: input, shape index: {}]
  %s3 = inlined_call_operand.hbm [shape: f32[11,384], index: 3, kind: input, shape index: {}]
  %s4 = inlined_call_operand.vmem [shape: f32[16,128], index: 4, kind: output, shape index: {}]
  %s5 = sld [smem:[#allocation0]]
  $region57: #{sanet_forward.1} parent=0
    _
  %s7 = ssub.s32 1, %s5
  %s8 = scalar_select 0, %s7, %s5
  $region1: #{sanet_forward.1} parent=0
    #allocation2 [shape = 'u8[294912]{0}', space=vmem, size = 0x48000, scoped, tag = 'input window, operand 2, single buffered']
    #allocation3 [shape = 's32[2]{0}', space=sflag, size = 0x8, scoped, tag = 'scoped memory for sanet_forward.1']
    #allocation4 [shape = 'u8[24576]{0}', space=vmem, size = 0x6000, scoped, tag = 'input window, operand 3, single buffered']
    #allocation5 [shape = 's32[1]{0}', space=sflag, size = 0x4, scoped, tag = 'scoped memory for sanet_forward.1']
    %9 = vsyncpa [#allocation3], 0
    %10 = vsyncpa [#allocation5], 0
    loop: start=0, step=1, limit=4
    $region2: #{sanet_forward.1} parent=1 // loop_pre_header
      _
    $region3: #{sanet_forward.1} parent=1 // loop_header
      %s12 = sphi 0, %s16
      %p13 = scmp.ge.s32.totalorder %s12, 4
      %s22 = sphi 0, %s24
      %s25 = sphi 0, %s22
      %s26 = sphi 0, %s25
      %s42 = sphi 0, %s26
      %s48 = sphi 0, %s50
      %s51 = sphi 0, %s48
      %s52 = sphi 0, %s51
      %s68 = sphi 0, %s52
      %s72 = sphi 0, %s72
      %s74 = sphi 0, %s72
      %s75 = sphi 0, %s74
      %s89 = sphi 0, %s75
      %s93 = sphi 0, %s93
      %s95 = sphi 0, %s93
      %s96 = sphi 0, %s95
      %s110 = sphi 0, %s96
      %s116 = sphi 0, %s118
      %s119 = sphi 0, %s116
      %s120 = sphi 0, %s119
      %s136 = sphi 0, %s120
    $region4: #{sanet_forward.1} parent=1 // loop_header_branch
      %15 = sbr.rel (%p13) target = $region8
    $region5: #{sanet_forward.1} parent=1 // loop_body
      %s17 = ssub.s32 %s12, 1
      %s18 = ssub.s32 %s12, 2
      %s19 = sadd.s32 %s12, 1
      %s20 = ssub.s32 %s12, %s19
      %p21 = scmp.eq.s32.totalorder %s20, 0
      %s23 = sadd.s32 %s22, 1
      %s24 = scalar_select %p21, %s22, %s23
      %p27 = pneg %p21
      %p28 = scmp.eq.s32.totalorder %s12, 1
      %p29 = por %p27, %p28
      %p30 = scmp.ne.s32.totalorder %s22, %s25
      %p31 = scmp.eq.s32.totalorder %s12, 0
      %p32 = por %p30, %p31
      %p33 = scmp.ne.s32.totalorder %s22, %s25
      %p34 = scmp.eq.s32.totalorder %s17, 1
      %p35 = por %p33, %p34
      %p36 = scmp.ne.s32.totalorder %s25, %s26
      %p37 = scmp.eq.s32.totalorder %s17, 0
      %p38 = por %p36, %p37
      %p39 = scmp.ne.s32.totalorder %s25, %s26
      %p40 = scmp.eq.s32.totalorder %s18, 1
      %p41 = por %p39, %p40
      %p43 = scmp.ne.s32.totalorder %s26, %s42
      %p44 = scmp.eq.s32.totalorder %s18, 0
      %p45 = por %p43, %p44
      %s46 = ssub.s32 %s12, %s19
      %p47 = scmp.eq.s32.totalorder %s46, 0
      %s49 = sadd.s32 %s48, 1
      %s50 = scalar_select %p47, %s48, %s49
      %p53 = pneg %p47
      %p54 = scmp.eq.s32.totalorder %s12, 1
      %p55 = por %p53, %p54
      %p56 = scmp.ne.s32.totalorder %s48, %s51
      %p57 = scmp.eq.s32.totalorder %s12, 0
      %p58 = por %p56, %p57
      %p59 = scmp.ne.s32.totalorder %s48, %s51
      %p60 = scmp.eq.s32.totalorder %s17, 1
      %p61 = por %p59, %p60
      %p62 = scmp.ne.s32.totalorder %s51, %s52
      %p63 = scmp.eq.s32.totalorder %s17, 0
      %p64 = por %p62, %p63
      %p65 = scmp.ne.s32.totalorder %s51, %s52
      %p66 = scmp.eq.s32.totalorder %s18, 1
      %p67 = por %p65, %p66
      %p69 = scmp.ne.s32.totalorder %s52, %s68
      %p70 = scmp.eq.s32.totalorder %s18, 0
      %p71 = por %p69, %p70
      %s73 = sadd.s32 %s72, 1
      %p76 = scmp.eq.s32.totalorder %s12, 1
      %p77 = scmp.ne.s32.totalorder %s72, %s74
      %p78 = scmp.eq.s32.totalorder %s12, 0
      %p79 = por %p77, %p78
      %p80 = scmp.ne.s32.totalorder %s72, %s74
      %p81 = scmp.eq.s32.totalorder %s17, 1
      %p82 = por %p80, %p81
      %p83 = scmp.ne.s32.totalorder %s74, %s75
      %p84 = scmp.eq.s32.totalorder %s17, 0
      %p85 = por %p83, %p84
      %p86 = scmp.ne.s32.totalorder %s74, %s75
      %p87 = scmp.eq.s32.totalorder %s18, 1
      %p88 = por %p86, %p87
      %p90 = scmp.ne.s32.totalorder %s75, %s89
      %p91 = scmp.eq.s32.totalorder %s18, 0
      %p92 = por %p90, %p91
      %s94 = sadd.s32 %s93, 1
      %p97 = scmp.eq.s32.totalorder %s12, 1
      %p98 = scmp.ne.s32.totalorder %s93, %s95
      %p99 = scmp.eq.s32.totalorder %s12, 0
      %p100 = por %p98, %p99
      %p101 = scmp.ne.s32.totalorder %s93, %s95
      %p102 = scmp.eq.s32.totalorder %s17, 1
      %p103 = por %p101, %p102
      %p104 = scmp.ne.s32.totalorder %s95, %s96
      %p105 = scmp.eq.s32.totalorder %s17, 0
      %p106 = por %p104, %p105
      %p107 = scmp.ne.s32.totalorder %s95, %s96
      %p108 = scmp.eq.s32.totalorder %s18, 1
      %p109 = por %p107, %p108
      %p111 = scmp.ne.s32.totalorder %s96, %s110
      %p112 = scmp.eq.s32.totalorder %s18, 0
      %p113 = por %p111, %p112
      %s114 = ssub.s32 %s12, %s19
      %p115 = scmp.eq.s32.totalorder %s114, 0
      %s117 = sadd.s32 %s116, 1
      %s118 = scalar_select %p115, %s116, %s117
      %p121 = pneg %p115
      %p122 = scmp.eq.s32.totalorder %s12, 1
      %p123 = por %p121, %p122
      %p124 = scmp.ne.s32.totalorder %s116, %s119
      %p125 = scmp.eq.s32.totalorder %s12, 0
      %p126 = por %p124, %p125
      %p127 = scmp.ne.s32.totalorder %s116, %s119
      %p128 = scmp.eq.s32.totalorder %s17, 1
      %p129 = por %p127, %p128
      %p130 = scmp.ne.s32.totalorder %s119, %s120
      %p131 = scmp.eq.s32.totalorder %s17, 0
      %p132 = por %p130, %p131
      %p133 = scmp.ne.s32.totalorder %s119, %s120
      %p134 = scmp.eq.s32.totalorder %s18, 1
      %p135 = por %p133, %p134
      %p137 = scmp.ne.s32.totalorder %s120, %s136
      %p138 = scmp.eq.s32.totalorder %s18, 0
      %p139 = por %p137, %p138
      %p140 = scmp.le.s32.totalorder 1, %s12
      %p141 = scmp.lt.s32.totalorder %s12, 3
      %p142 = pnand %p140, %p141
      %p143 = pneg %p142
      // Predicated region
      $region9: #{sanet_forward.1} parent=5 // pred_check
        _
      $region10: #{sanet_forward.1} parent=5 // pred_check_branch
        %145 = sbr.rel (%p142) target = $region12
      $region11: #{sanet_forward.1} parent=5 // pred_region
        %s146 = ssub.s32 %s12, 1
        // Predicated region
        $region13: #{sanet_forward.1} parent=11 // pred_check
          %p147 = pneg %p85
        $region14: #{sanet_forward.1} parent=11 // pred_check_branch
          %149 = sbr.rel (%p147) target = $region16
        $region15: #{sanet_forward.1} parent=11 // pred_region
          %151 = vsyncadd [#allocation3], 0
          %s152 = sshll.u32 %s2, 4
          %s153 = int_to_ptr.hbm [resolvable:$true] %s152
          %s154 = sshll.u32 [#allocation2], 4
          %s155 = int_to_ptr.vmem [resolvable:$true] %s154
          %160 = dma.hbm_to_vmem [thread:$0]  %s153, 9216, %s155, [#allocation3], 192, 192, 12
        $region16: #{sanet_forward.1} parent=11 // pred_fallthru
          _
        // Predicated region
        $region17: #{sanet_forward.1} parent=11 // pred_check
          %p161 = pneg %p106
        $region18: #{sanet_forward.1} parent=11 // pred_check_branch
          %163 = sbr.rel (%p161) target = $region20
        $region19: #{sanet_forward.1} parent=11 // pred_region
          %165 = vsyncadd [#allocation5], 0
          %s166 = sshll.u32 %s3, 4
          %s167 = int_to_ptr.hbm [resolvable:$true] %s166
          %s168 = sshll.u32 [#allocation4], 4
          %s169 = int_to_ptr.vmem [resolvable:$true] %s168
          %174 = dma.hbm_to_vmem [thread:$0]  %s167, 768, %s169, [#allocation5], 384, 384, 24
        $region20: #{sanet_forward.1} parent=11 // pred_fallthru
          _
      $region12: #{sanet_forward.1} parent=5 // pred_fallthru
        _
      %p175 = scmp.lt.s32.totalorder %s12, 2
      // Predicated region
      $region21: #{sanet_forward.1} parent=5 // pred_check
        %p176 = pneg %p175
      $region22: #{sanet_forward.1} parent=5 // pred_check_branch
        %178 = sbr.rel (%p176) target = $region24
      $region23: #{sanet_forward.1} parent=5 // pred_region
        // Predicated region
        $region25: #{sanet_forward.1} parent=23 // pred_check
          %p179 = pneg %p32
        $region26: #{sanet_forward.1} parent=23 // pred_check_branch
          %181 = sbr.rel (%p179) target = $region28
        $region27: #{sanet_forward.1} parent=23 // pred_region
          %p182 = scmp.lt.s32.totalorder %s12, 1
          %s183 = scalar_select %p182, %s12, 1
          %s184 = smul.addr %s183, 8
          %s185 = scalar_lea.vmem %s0, %s184
        $region28: #{sanet_forward.1} parent=23 // pred_fallthru
          _
        // Predicated region
        $region29: #{sanet_forward.1} parent=23 // pred_check
          %p186 = pneg %p58
        $region30: #{sanet_forward.1} parent=23 // pred_check_branch
          %188 = sbr.rel (%p186) target = $region32
        $region31: #{sanet_forward.1} parent=23 // pred_region
          %p189 = scmp.lt.s32.totalorder %s12, 1
          %s190 = scalar_select %p189, %s12, 1
          %s191 = scalar_lea.vmem %s1, %s190
        $region32: #{sanet_forward.1} parent=23 // pred_fallthru
          _
      $region24: #{sanet_forward.1} parent=5 // pred_fallthru
        _
      %p192 = scmp.le.s32.totalorder 1, %s12
      %p193 = scmp.lt.s32.totalorder %s12, 3
      %p194 = pnand %p192, %p193
      %p195 = pneg %p194
      // Predicated region
      $region33: #{sanet_forward.1} parent=5 // pred_check
        _
      $region34: #{sanet_forward.1} parent=5 // pred_check_branch
        %197 = sbr.rel (%p194) target = $region36
      $region35: #{sanet_forward.1} parent=5 // pred_region
        %s198 = ssub.s32 %s12, 1
        // Predicated region
        $region37: #{sanet_forward.1} parent=35 // pred_check
          %p199 = pneg %p85
        $region38: #{sanet_forward.1} parent=35 // pred_check_branch
          %201 = sbr.rel (%p199) target = $region40
        $region39: #{sanet_forward.1} parent=35 // pred_region
          %203 = dma.done [#allocation3], 9216
        $region40: #{sanet_forward.1} parent=35 // pred_fallthru
          _
        // Predicated region
        $region41: #{sanet_forward.1} parent=35 // pred_check
          %p204 = pneg %p106
        $region42: #{sanet_forward.1} parent=35 // pred_check_branch
          %206 = sbr.rel (%p204) target = $region44
        $region43: #{sanet_forward.1} parent=35 // pred_region
          %208 = dma.done [#allocation5], 768
        $region44: #{sanet_forward.1} parent=35 // pred_fallthru
          _
        %p209 = scmp.lt.s32.totalorder %s17, 1
        %s210 = scalar_select %p209, %s17, 1
        %s211 = smul.addr %s210, 8
        %s212 = scalar_lea.vmem %s0, %s211
        %p213 = pneg %p38
        %p214 = pneg %p35
        %p215 = scmp.lt.s32.totalorder %s17, 1
        %s216 = scalar_select %p215, %s17, 1
        %s217 = scalar_lea.vmem %s1, %s216
        %p218 = pneg %p64
        %p219 = pneg %p61
        %p220 = pneg %p85
        %p221 = pneg %p82
        %p222 = pneg %p106
        %p223 = pneg %p103
        %p224 = pneg %p132
        %p225 = pneg %p129
        %p226 = scmp.lt.s32.totalorder %s17, 1
        %s227 = scalar_select %p226, %s17, 1
        %s228 = smul.addr %s227, 8
        %s229 = scalar_lea.vmem %s4, %s228
        %p230 = scmp.lt.s32.totalorder %s17, 1
        %s231 = scalar_select %p230, %s17, 1
        %s232 = smul.addr %s231, 8
        %s233 = scalar_lea.vmem %s0, %s232
        %p234 = scmp.lt.s32.totalorder %s17, 1
        %s235 = scalar_select %p234, %s17, 1
        %s236 = scalar_lea.vmem %s1, %s235
        %p237 = scmp.lt.s32.totalorder %s17, 1
        %s238 = scalar_select %p237, %s17, 1
        %s239 = smul.addr %s238, 8
        %s240 = scalar_lea.vmem %s4, %s239
        %v242 = vld [vmem:[%s233] sm:$0xff]
        %v243 = vlaneseq
        %v244 = vshrl.u32 %v243, 7
        %vm245 = vcmp.eq.s32.totalorder %v242, 0
        %v246 = vadd.s32 %v244, 1
        %v247 = vsel %vm245, 0, %v246
        %v248 = vlaneseq
        %v249 = vand.u32 %v248, 127
        %250 = vset.pattern.permute.xlu0 0
        %251 = vperm.xlu0 %250, %v242
        %v252 = vpop.permute.xlu0 %251
        %vm253 = vcmp.eq.s32.totalorder %v249, %v252
        %v254 = vadd.s32 %v247, 32
        %255 = vset.pattern.permute.xlu0 0
        %256 = vperm.xlu0 %255, %v254
        %v257 = vpop.permute.xlu0 %256
        %vm258 = vcmp.eq.s32.totalorder %v249, %v257
        %vm259 = vmor %vm253, %vm258
        %v260 = vsel %vm259, 1.0, 0.0
        %v261 = vpack.c.bf16 %v260, %v260
        %v262 = vld [vmem:[#allocation2] sm:$0xf]
        %v263 = vld [vmem:[#allocation2 + $0xc] sm:$0xf]
        %v264 = vld [vmem:[#allocation2 + $0x18] sm:$0xf]
        %v265 = vld [vmem:[#allocation2 + $0x24] sm:$0xf]
        %v266 = vld [vmem:[#allocation2 + $0x30] sm:$0xf]
        %v267 = vld [vmem:[#allocation2 + $0x3c] sm:$0xf]
        %v268 = vld [vmem:[#allocation2 + $0x48] sm:$0xf]
        %v269 = vld [vmem:[#allocation2 + $0x54] sm:$0xf]
        %v278 = vunpack.c.l.b16 %v262
        %v279 = vunpack.c.l.b16 %v263
        %v280 = vunpack.c.l.b16 %v264
        %v281 = vunpack.c.l.b16 %v265
        %v282 = vunpack.c.l.b16 %v266
        %v283 = vunpack.c.l.b16 %v267
        %v284 = vunpack.c.l.b16 %v268
        %v285 = vunpack.c.l.b16 %v269
        %v286 = vpack.c.b16 %v279, %v278
        %v287 = vpack.c.b16 %v281, %v280
        %v288 = vpack.c.b16 %v283, %v282
        %v289 = vpack.c.b16 %v285, %v284
        %vm294 = vcmask 523264
        %v296 = vsel %vm294, %v261, 0
        %298 = vmatpush.bf16.msra.mxu0 0
        %299 = vmatpush.bf16.msra.mxu0 0
        %300 = vmatpush.bf16.msra.mxu0 0
        %301 = vmatpush.bf16.msra.mxu0 0
        %302 = vmatpush.bf16.msra.mxu0 %v289
        %303 = vmatpush.bf16.msra.mxu0 %v288
        %304 = vmatpush.bf16.msra.mxu0 %v287
        %305 = vmatpush.bf16.msra.mxu0 %v286
        %306 = vmatmul.bf16.gmra.mxu0 %v296
        %v307 = vpop.f32.mrf.mxu0
        %v308 = vadd.f32 0.0, %v307
        %v309 = vpop.f32.mrf.mxu0
        %310 = vdwg.mxu0
        %v311 = vld [vmem:[#allocation2 + $0x60] sm:$0xf]
        %v312 = vld [vmem:[#allocation2 + $0x6c] sm:$0xf]
        %v313 = vld [vmem:[#allocation2 + $0x78] sm:$0xf]
        %v314 = vld [vmem:[#allocation2 + $0x84] sm:$0xf]
        %v315 = vpack.c.bf16 %v308, %v308
        %v316 = vld [vmem:[#allocation4] ss:$0 sm:$0xff]
        %v321 = vunpack.c.l.b16 %v311
        %v322 = vunpack.c.l.b16 %v312
        %v323 = vunpack.c.l.b16 %v313
        %v324 = vunpack.c.l.b16 %v314
        %v325 = vpack.c.b16 %v322, %v321
        %v326 = vpack.c.b16 %v324, %v323
        %vm329 = vcmask 261120
        %v331 = vsel %vm329, %v315, 0
        %333 = vmatpush.bf16.msra.mxu0 0
        %334 = vmatpush.bf16.msra.mxu0 0
        %335 = vmatpush.bf16.msra.mxu0 0
        %336 = vmatpush.bf16.msra.mxu0 0
        %337 = vmatpush.bf16.msra.mxu0 0
        %338 = vmatpush.bf16.msra.mxu0 0
        %339 = vmatpush.bf16.msra.mxu0 %v326
        %340 = vmatpush.bf16.msra.mxu0 %v325
        %341 = vmatmul.bf16.gmra.mxu0 %v331
        %v342 = vpop.f32.mrf.mxu0
        %v343 = vadd.f32 %v316, %v342
        %v344 = vpop.f32.mrf.mxu0
        %345 = vdwg.mxu0
        %v346 = vld [vmem:[%s236] sm:$0x1]
        %v347 = vld [vmem:[#allocation2 + $0x90] sm:$0xff]
        %v348 = vld [vmem:[#allocation2 + $0x98] sm:$0xf]
        %v349 = vld [vmem:[#allocation2 + $0x9c] sm:$0xff]
        %v350 = vld [vmem:[#allocation2 + $0xa4] sm:$0xf]
        %v351 = vld [vmem:[#allocation2 + $0xa8] sm:$0xff]
        %v352 = vld [vmem:[#allocation2 + $0xb0] sm:$0xf]
        %v353 = vld [vmem:[#allocation2 + $0xb4] sm:$0xff]
        %v354 = vld [vmem:[#allocation2 + $0xbc] sm:$0xf]
        %v355 = vpack.c.bf16 %v343, %v343
        %s356 = scalar_lea.vmem [#allocation4], 1
        %v357 = vld [vmem:[%s356] ss:$8 sm:$0x7]
        %v359 = vperm.slane %v357, 0
        %v360 = vperm.slane %v357, 1
        %v361 = vperm.slane %v357, 2
        %v373 = vunpack.c.l.b16 %v347
        %v374 = vunpack.c.h.b16 %v347
        %v375 = vunpack.c.l.b16 %v348
        %v376 = vunpack.c.l.b16 %v349
        %v377 = vunpack.c.h.b16 %v349
        %v378 = vunpack.c.l.b16 %v350
        %v379 = vunpack.c.l.b16 %v351
        %v380 = vunpack.c.h.b16 %v351
        %v381 = vunpack.c.l.b16 %v352
        %v382 = vunpack.c.l.b16 %v353
        %v383 = vunpack.c.h.b16 %v353
        %v384 = vunpack.c.l.b16 %v354
        %v385 = vpack.c.b16 %v376, %v373
        %v386 = vpack.c.b16 %v377, %v374
        %v387 = vpack.c.b16 %v378, %v375
        %v388 = vpack.c.b16 %v382, %v379
        %v389 = vpack.c.b16 %v383, %v380
        %v390 = vpack.c.b16 %v384, %v381
        %v398 = vsel %vm329, %v355, 0
        %400 = vmatpush.bf16.msra.mxu0 0
        %401 = vmatpush.bf16.msra.mxu0 0
        %402 = vmatpush.bf16.msra.mxu0 0
        %403 = vmatpush.bf16.msra.mxu0 0
        %404 = vmatpush.bf16.msra.mxu0 0
        %405 = vmatpush.bf16.msra.mxu0 0
        %406 = vmatpush.bf16.msra.mxu0 %v388
        %407 = vmatpush.bf16.msra.mxu0 %v385
        %408 = vmatmul.bf16.gmra.mxu0 %v398
        %v409 = vpop.f32.mrf.mxu0
        %v410 = vadd.f32 %v359, %v409
        %v411 = vpop.f32.mrf.mxu0
        %412 = vdwg.mxu0
        %413 = vmatpush.bf16.msra.mxu0 0
        %414 = vmatpush.bf16.msra.mxu0 0
        %415 = vmatpush.bf16.msra.mxu0 0
        %416 = vmatpush.bf16.msra.mxu0 0
        %417 = vmatpush.bf16.msra.mxu0 0
        %418 = vmatpush.bf16.msra.mxu0 0
        %419 = vmatpush.bf16.msra.mxu0 %v389
        %420 = vmatpush.bf16.msra.mxu0 %v386
        %421 = vmatmul.bf16.gmra.mxu0 %v398
        %v422 = vpop.f32.mrf.mxu0
        %v423 = vadd.f32 %v360, %v422
        %v424 = vpop.f32.mrf.mxu0
        %425 = vdwg.mxu0
        %426 = vmatpush.bf16.msra.mxu0 0
        %427 = vmatpush.bf16.msra.mxu0 0
        %428 = vmatpush.bf16.msra.mxu0 0
        %429 = vmatpush.bf16.msra.mxu0 0
        %430 = vmatpush.bf16.msra.mxu0 0
        %431 = vmatpush.bf16.msra.mxu0 0
        %432 = vmatpush.bf16.msra.mxu0 %v390
        %433 = vmatpush.bf16.msra.mxu0 %v387
        %434 = vmatmul.bf16.gmra.mxu0 %v398
        %v435 = vpop.f32.mrf.mxu0
        %v436 = vadd.f32 %v361, %v435
        %v437 = vpop.f32.mrf.mxu0
        %438 = vdwg.mxu0
        %v439 = vpack.c.bf16 %v410, %v410
        %v440 = vpack.c.bf16 %v423, %v423
        %v441 = vpack.c.bf16 %v436, %v436
        %442 = vmatpush.bf16.xpose.msra.mxu0 0
        %443 = vmatpush.bf16.xpose.msra.mxu0 0
        %444 = vmatpush.bf16.xpose.msra.mxu0 0
        %445 = vmatpush.bf16.xpose.msra.mxu0 0
        %446 = vmatpush.bf16.xpose.msra.mxu0 0
        %447 = vmatpush.bf16.xpose.msra.mxu0 0
        %448 = vmatpush.bf16.xpose.msra.mxu0 0
        %449 = vmatpush.bf16.xpose.msra.mxu0 %v440
        %450 = vmatmul.bf16.gmra.mxu0 %v439
        %v451 = vpop.f32.mrf.mxu0
        %v452 = vadd.f32 0.0, %v451
        %v453 = vpop.f32.mrf.mxu0
        %454 = vdwg.mxu0
        %v455 = vmul.f32 %v452, 0.17677669
        %v457 = vperm.slane %v346, 0
        %v459 = vadd.f32 %v455, %v457
        %vm460 = vcmask 64512
        %v461 = vsel %vm460, %v459, -inf
        %462 = vmax.xlane.f32.xlu0 %v461
        %v463 = vpop.xlane.xlu0 %462
        %v464 = vsub.f32 %v459, %v463
        %v465 = vmul.f32 %v464, 1.442695
        %v466 = vpow.pop %v465
        %v467 = vsel %vm460, %v466, 0.0
        %468 = vadd.xlane.f32.xlu0 %v467
        %v469 = vpop.xlane.xlu0 %468
        %v470 = vrcp.pop %v469
        %v471 = vmul.f32 %v466, %v470
        %v472 = vpack.c.bf16 %v471, %v471
        %v474 = vsel %vm460, %v472, 0
        %vm476 = vcmask 1043456
        %v478 = vsel %vm476, %v441, 0
        %480 = vmatpush.bf16.msra.mxu0 0
        %481 = vmatpush.bf16.msra.mxu0 0
        %482 = vmatpush.bf16.msra.mxu0 0
        %483 = vmatpush.bf16.msra.mxu0 0
        %484 = vmatpush.bf16.msra.mxu0 0
        %485 = vmatpush.bf16.msra.mxu0 0
        %486 = vmatpush.bf16.msra.mxu0 0
        %487 = vmatpush.bf16.msra.mxu0 %v478
        %488 = vmatmul.bf16.gmra.mxu0 %v474
        %v489 = vpop.f32.mrf.mxu0
        %v490 = vadd.f32 0.0, %v489
        %v491 = vpop.f32.mrf.mxu0
        %492 = vdwg.mxu0
        %v493 = vld [vmem:[#allocation2 + $0xc0] sm:$0xf]
        %v494 = vld [vmem:[#allocation2 + $0xcc] sm:$0xf]
        %v495 = vld [vmem:[#allocation2 + $0xd8] sm:$0xf]
        %v496 = vld [vmem:[#allocation2 + $0xe4] sm:$0xf]
        %v497 = vld [vmem:[#allocation2 + $0xf0] sm:$0xf]
        %v498 = vld [vmem:[#allocation2 + $0xfc] sm:$0xf]
        %v499 = vld [vmem:[#allocation2 + $0x108] sm:$0xf]
        %v500 = vld [vmem:[#allocation2 + $0x114] sm:$0xf]
        %v501 = vld [vmem:[#allocation2 + $0x120] sm:$0xf]
        %v502 = vld [vmem:[#allocation2 + $0x12c] sm:$0xf]
        %v503 = vld [vmem:[#allocation2 + $0x138] sm:$0xf]
        %v504 = vld [vmem:[#allocation2 + $0x144] sm:$0xf]
        %v505 = vld [vmem:[#allocation2 + $0x150] sm:$0xf]
        %v506 = vld [vmem:[#allocation2 + $0x15c] sm:$0xf]
        %v507 = vld [vmem:[#allocation2 + $0x168] sm:$0xf]
        %v508 = vld [vmem:[#allocation2 + $0x174] sm:$0xf]
        %v509 = vpack.c.bf16 %v490, %v490
        %v510 = vld [vmem:[#allocation4 + $0x2] ss:$0 sm:$0xff]
        %v527 = vunpack.c.l.b16 %v493
        %v528 = vunpack.c.l.b16 %v494
        %v529 = vunpack.c.l.b16 %v495
        %v530 = vunpack.c.l.b16 %v496
        %v531 = vunpack.c.l.b16 %v497
        %v532 = vunpack.c.l.b16 %v498
        %v533 = vunpack.c.l.b16 %v499
        %v534 = vunpack.c.l.b16 %v500
        %v535 = vunpack.c.l.b16 %v501
        %v536 = vunpack.c.l.b16 %v502
        %v537 = vunpack.c.l.b16 %v503
        %v538 = vunpack.c.l.b16 %v504
        %v539 = vunpack.c.l.b16 %v505
        %v540 = vunpack.c.l.b16 %v506
        %v541 = vunpack.c.l.b16 %v507
        %v542 = vunpack.c.l.b16 %v508
        %v543 = vpack.c.b16 %v528, %v527
        %v544 = vpack.c.b16 %v530, %v529
        %v545 = vpack.c.b16 %v532, %v531
        %v546 = vpack.c.b16 %v534, %v533
        %v547 = vpack.c.b16 %v536, %v535
        %v548 = vpack.c.b16 %v538, %v537
        %v549 = vpack.c.b16 %v540, %v539
        %v550 = vpack.c.b16 %v542, %v541
        %559 = vmatpush.bf16.msra.mxu0 %v550
        %560 = vmatpush.bf16.msra.mxu0 %v549
        %561 = vmatpush.bf16.msra.mxu0 %v548
        %562 = vmatpush.bf16.msra.mxu0 %v547
        %563 = vmatpush.bf16.msra.mxu0 %v546
        %564 = vmatpush.bf16.msra.mxu0 %v545
        %565 = vmatpush.bf16.msra.mxu0 %v544
        %566 = vmatpush.bf16.msra.mxu0 %v543
        %567 = vmatmul.bf16.gmra.mxu0 %v509
        %v568 = vpop.f32.mrf.mxu0
        %v569 = vadd.f32 %v510, %v568
        %v570 = vpop.f32.mrf.mxu0
        %571 = vdwg.mxu0
        %v572 = vadd.f32 %v343, %v569
        %v573 = vld [vmem:[#allocation4 + $0x3] ss:$0 sm:$0xff]
        %v574 = vld [vmem:[#allocation4 + $0x4] ss:$0 sm:$0xff]
        %v575 = vsel %vm329, %v572, 0.0
        %576 = vadd.xlane.f32.xlu0 %v575
        %v577 = vpop.xlane.xlu0 %576
        %v578 = vrcp.pop 32.0
        %v579 = vmul.f32 32.0, %v578
        %v580 = vsub.f32 1.0, %v579
        %v581 = vmul.f32 %v578, %v580
        %v582 = vadd.f32 %v578, %v581
        %vm583 = vweird.f32 %v578
        %v584 = vsel %vm583, %v578, %v582
        %v585 = vmul.f32 %v577, %v584
        %v586 = vsub.f32 %v572, %v585
        %v587 = vmul.f32 %v586, %v586
        %v588 = vsel %vm329, %v587, 0.0
        %589 = vadd.xlane.f32.xlu0 %v588
        %v590 = vpop.xlane.xlu0 %589
        %v591 = vmul.f32 %v590, %v584
        %v592 = vadd.f32 %v591, 1e-05
        %v593 = vrsqrt.pop %v592
        %v594 = vmul.f32 %v593, %v592
        %v595 = vmul.f32 %v594, %v593
        %v596 = vmul.f32 0.5, %v595
        %v597 = vsub.f32 1.5, %v596
        %v598 = vmul.f32 %v593, %v597
        %vm599 = vweird.f32 %v592
        %vm600 = vweird.f32 %v593
        %vm601 = vmor %vm599, %vm600
        %v602 = vsel %vm601, %v593, %v598
        %v603 = vmul.f32 %v586, %v602
        %v604 = vmul.f32 %v603, %v573
        %v605 = vadd.f32 %v604, %v574
        %v606 = vld [vmem:[#allocation2 + $0x180] sm:$0xf]
        %v607 = vld [vmem:[#allocation2 + $0x18c] sm:$0xf]
        %v608 = vld [vmem:[#allocation2 + $0x198] sm:$0xf]
        %v609 = vld [vmem:[#allocation2 + $0x1a4] sm:$0xf]
        %v610 = vpack.c.bf16 %v605, %v605
        %v611 = vld [vmem:[#allocation4 + $0x5] ss:$0 sm:$0xff]
        %v616 = vunpack.c.l.b16 %v606
        %v617 = vunpack.c.l.b16 %v607
        %v618 = vunpack.c.l.b16 %v608
        %v619 = vunpack.c.l.b16 %v609
        %v620 = vpack.c.b16 %v617, %v616
        %v621 = vpack.c.b16 %v619, %v618
        %v625 = vsel %vm329, %v610, 0
        %627 = vmatpush.bf16.msra.mxu0 0
        %628 = vmatpush.bf16.msra.mxu0 0
        %629 = vmatpush.bf16.msra.mxu0 0
        %630 = vmatpush.bf16.msra.mxu0 0
        %631 = vmatpush.bf16.msra.mxu0 0
        %632 = vmatpush.bf16.msra.mxu0 0
        %633 = vmatpush.bf16.msra.mxu0 %v621
        %634 = vmatpush.bf16.msra.mxu0 %v620
        %635 = vmatmul.bf16.gmra.mxu0 %v625
        %v636 = vpop.f32.mrf.mxu0
        %v637 = vadd.f32 %v611, %v636
        %v638 = vpop.f32.mrf.mxu0
        %639 = vdwg.mxu0
        %v640 = vmax.f32 %v637, 0.0
        %v641 = vld [vmem:[#allocation2 + $0x1b0] sm:$0xf]
        %v642 = vld [vmem:[#allocation2 + $0x1bc] sm:$0xf]
        %v643 = vld [vmem:[#allocation2 + $0x1c8] sm:$0xf]
        %v644 = vld [vmem:[#allocation2 + $0x1d4] sm:$0xf]
        %v645 = vpack.c.bf16 %v640, %v640
        %v646 = vld [vmem:[#allocation4 + $0x6] ss:$0 sm:$0xff]
        %v651 = vunpack.c.l.b16 %v641
        %v652 = vunpack.c.l.b16 %v642
        %v653 = vunpack.c.l.b16 %v643
        %v654 = vunpack.c.l.b16 %v644
        %v655 = vpack.c.b16 %v652, %v651
        %v656 = vpack.c.b16 %v654, %v653
        %v660 = vsel %vm329, %v645, 0
        %662 = vmatpush.bf16.msra.mxu0 0
        %663 = vmatpush.bf16.msra.mxu0 0
        %664 = vmatpush.bf16.msra.mxu0 0
        %665 = vmatpush.bf16.msra.mxu0 0
        %666 = vmatpush.bf16.msra.mxu0 0
        %667 = vmatpush.bf16.msra.mxu0 0
        %668 = vmatpush.bf16.msra.mxu0 %v656
        %669 = vmatpush.bf16.msra.mxu0 %v655
        %670 = vmatmul.bf16.gmra.mxu0 %v660
        %v671 = vpop.f32.mrf.mxu0
        %v672 = vadd.f32 %v646, %v671
        %v673 = vpop.f32.mrf.mxu0
        %674 = vdwg.mxu0
        %v675 = vadd.f32 %v605, %v672
        %v676 = vld [vmem:[#allocation4 + $0x7] ss:$0 sm:$0xff]
        %v677 = vld [vmem:[#allocation4 + $0x18] ss:$0 sm:$0xff]
        %v678 = vsel %vm329, %v675, 0.0
        %679 = vadd.xlane.f32.xlu0 %v678
        %v680 = vpop.xlane.xlu0 %679
        %v681 = vmul.f32 %v680, %v584
        %v682 = vsub.f32 %v675, %v681
        %v683 = vmul.f32 %v682, %v682
        %v684 = vsel %vm329, %v683, 0.0
        %685 = vadd.xlane.f32.xlu0 %v684
        %v686 = vpop.xlane.xlu0 %685
        %v687 = vmul.f32 %v686, %v584
        %v688 = vadd.f32 %v687, 1e-05
        %v689 = vrsqrt.pop %v688
        %v690 = vmul.f32 %v689, %v688
        %v691 = vmul.f32 %v690, %v689
        %v692 = vmul.f32 0.5, %v691
        %v693 = vsub.f32 1.5, %v692
        %v694 = vmul.f32 %v689, %v693
        %vm695 = vweird.f32 %v688
        %vm696 = vweird.f32 %v689
        %vm697 = vmor %vm695, %vm696
        %v698 = vsel %vm697, %v689, %v694
        %v699 = vmul.f32 %v682, %v698
        %v700 = vmul.f32 %v699, %v676
        %v701 = vadd.f32 %v700, %v677
        %v702 = vsel %vm329, %v701, -inf
        %v703 = vrot.slane %v702, 4
        %v704 = vmax.f32 %v702, %v703
        %v705 = vrot.slane %v704, 2
        %v706 = vmax.f32 %v704, %v705
        %v707 = vrot.slane %v706, 1
        %v708 = vmax.f32 %v706, %v707
        %vm709 = vcmask 1040384
        %v710 = vsel %vm709, %v708, 0.0
        %v711 = vld [vmem:[#allocation2 + $0x1e0] sm:$0xf]
        %v712 = vld [vmem:[#allocation2 + $0x1ec] sm:$0xf]
        %v713 = vld [vmem:[#allocation2 + $0x1f8] sm:$0xf]
        %v714 = vld [vmem:[#allocation2 + $0x204] sm:$0xf]
        %v715 = vpack.c.bf16 %v710, %v710
        %v716 = vld [vmem:[#allocation4 + $0x19] ss:$0 sm:$0xff]
        %v721 = vunpack.c.l.b16 %v711
        %v722 = vunpack.c.l.b16 %v712
        %v723 = vunpack.c.l.b16 %v713
        %v724 = vunpack.c.l.b16 %v714
        %v725 = vpack.c.b16 %v722, %v721
        %v726 = vpack.c.b16 %v724, %v723
        %v730 = vsel %vm329, %v715, 0
        %732 = vmatpush.bf16.msra.mxu0 0
        %733 = vmatpush.bf16.msra.mxu0 0
        %734 = vmatpush.bf16.msra.mxu0 0
        %735 = vmatpush.bf16.msra.mxu0 0
        %736 = vmatpush.bf16.msra.mxu0 0
        %737 = vmatpush.bf16.msra.mxu0 0
        %738 = vmatpush.bf16.msra.mxu0 %v726
        %739 = vmatpush.bf16.msra.mxu0 %v725
        %740 = vmatmul.bf16.gmra.mxu0 %v730
        %v741 = vpop.f32.mrf.mxu0
        %v742 = vadd.f32 %v716, %v741
        %v743 = vpop.f32.mrf.mxu0
        %744 = vdwg.mxu0
        %v745 = vmax.f32 %v742, 0.0
        %v746 = vld [vmem:[#allocation2 + $0x210] sm:$0xf]
        %v747 = vld [vmem:[#allocation2 + $0x21c] sm:$0xf]
        %v748 = vld [vmem:[#allocation2 + $0x228] sm:$0xf]
        %v749 = vld [vmem:[#allocation2 + $0x234] sm:$0xf]
        %v750 = vpack.c.bf16 %v745, %v745
        %v751 = vld [vmem:[#allocation4 + $0x1a] ss:$0 sm:$0xff]
        %v756 = vunpack.c.l.b16 %v746
        %v757 = vunpack.c.l.b16 %v747
        %v758 = vunpack.c.l.b16 %v748
        %v759 = vunpack.c.l.b16 %v749
        %v760 = vpack.c.b16 %v757, %v756
        %v761 = vpack.c.b16 %v759, %v758
        %v765 = vsel %vm329, %v750, 0
        %767 = vmatpush.bf16.msra.mxu0 0
        %768 = vmatpush.bf16.msra.mxu0 0
        %769 = vmatpush.bf16.msra.mxu0 0
        %770 = vmatpush.bf16.msra.mxu0 0
        %771 = vmatpush.bf16.msra.mxu0 0
        %772 = vmatpush.bf16.msra.mxu0 0
        %773 = vmatpush.bf16.msra.mxu0 %v761
        %774 = vmatpush.bf16.msra.mxu0 %v760
        %775 = vmatmul.bf16.gmra.mxu0 %v765
        %v776 = vpop.f32.mrf.mxu0
        %v777 = vadd.f32 %v751, %v776
        %v778 = vpop.f32.mrf.mxu0
        %779 = vdwg.mxu0
        %780 = vst [vmem:[%s240] sm:$0xff] %v777
        %p781 = scmp.lt.s32.totalorder %s17, 1
        %s782 = scalar_select %p781, %s17, 1
        %s783 = smul.addr %s782, 8
        %s784 = scalar_lea.vmem %s4, %s783
        // Predicated region
        $region45: #{sanet_forward.1} parent=35 // pred_check
          %p785 = pneg %p129
        $region46: #{sanet_forward.1} parent=35 // pred_check_branch
          %787 = sbr.rel (%p785) target = $region48
        $region47: #{sanet_forward.1} parent=35 // pred_region
          _
        $region48: #{sanet_forward.1} parent=35 // pred_fallthru
          _
      $region36: #{sanet_forward.1} parent=5 // pred_fallthru
        _
      %p788 = scmp.le.s32.totalorder 2, %s12
      // Predicated region
      $region49: #{sanet_forward.1} parent=5 // pred_check
        %p789 = pneg %p788
      $region50: #{sanet_forward.1} parent=5 // pred_check_branch
        %791 = sbr.rel (%p789) target = $region52
      $region51: #{sanet_forward.1} parent=5 // pred_region
        %s792 = ssub.s32 %s12, 2
        // Predicated region
        $region53: #{sanet_forward.1} parent=51 // pred_check
          %p793 = pneg %p135
        $region54: #{sanet_forward.1} parent=51 // pred_check_branch
          %795 = sbr.rel (%p793) target = $region56
        $region55: #{sanet_forward.1} parent=51 // pred_region
          %p796 = scmp.lt.s32.totalorder %s18, 1
          %s797 = scalar_select %p796, %s18, 1
          %s798 = smul.addr %s797, 8
          %s799 = scalar_lea.vmem %s4, %s798
        $region56: #{sanet_forward.1} parent=51 // pred_fallthru
          _
      $region52: #{sanet_forward.1} parent=5 // pred_fallthru
        _
    $region6: #{sanet_forward.1} parent=1 // loop_footer
      %s16 = sadd.s32 1, %s12
    $region7: #{sanet_forward.1} parent=1 // loop_footer_branch
      %11 = sbr.rel target = $region3
    $region8: #{sanet_forward.1} parent=1 // loop_exit
      _
    %800 = vsyncpa [#allocation3], 1
    %s801 = scalar_lea.sflag [#allocation3], 1
    %802 = vsyncpa %s801, 1
    %803 = vsyncpa [#allocation5], 1

</llo_original>
